<compile_context>
chip_gen: v6e
topology: v6e:2x2x1
jax: 0.10.0
libtpu: 0.0.40
codegen_flags: <defaults>
</compile_context>

<pallas_src>
import functools

import jax
import jax.numpy as jnp
from jax.experimental import pallas as pl
from jax.experimental.pallas import tpu as pltpu


def _kv_gather_kernel(p2, apply_soft, *refs):
    if apply_soft:
        idx_ref, w_ref, kv_ref, out_ref = refs
    else:
        idx_ref, kv_ref, out_ref = refs
        w_ref = None

    rows = idx_ref.shape[0]  # chunk_i * topk

    # One-hot selection matrix on the VPU: sel[j, r] = (idx[j] == r).
    col = jax.lax.broadcasted_iota(jnp.int32, (rows, p2), 1)
    onehot = (idx_ref[...] == col).astype(jnp.float32)          # (rows, p2)

    # Gather = one-hot matmul on the MXU (exact for 0/1 selection weights).
    gathered = jnp.dot(onehot, kv_ref[...].astype(jnp.float32),
                       preferred_element_type=jnp.float32)      # (rows, w2*c_kv)

    if apply_soft:
        # Elementwise f32 scale on the VPU, (rows, 1) broadcast along lanes.
        gathered = gathered * w_ref[...].astype(jnp.float32)

    out_ref[...] = gathered.astype(out_ref.dtype)


def _choose_chunk_i(p2, topk, w2c, out_itemsize, max_out_block_bytes=4 << 20):
    """Largest divisor of p2 whose output block fits the VMEM budget.

    chunk_i must be p2 (full extent) or have (chunk_i * topk) % 8 == 0 so the
    block's second-minor dim satisfies the (8, 128) tiling constraint.
    """
    best = None
    for d in range(1, p2 + 1):
        if p2 % d:
            continue
        if d != p2 and (d * topk) % 8:
            continue
        if d * topk * w2c * out_itemsize <= max_out_block_bytes:
            best = d
    return best if best is not None else p2


def kv_gather(r_idx, r_weight, kv, mul_weight="none"):
    assert mul_weight in ("none", "soft", "hard")
    if mul_weight == "hard":
        # TODO(synk): PyTorch module raises NotImplementedError for 'hard' too.
        raise NotImplementedError("differentiable hard routing TBA")

    n, p2, w2, c_kv = kv.shape
    topk = r_idx.shape[-1]
    w2c = w2 * c_kv
    apply_soft = mul_weight == "soft"

    out_dt = jnp.result_type(kv.dtype, r_weight.dtype) if apply_soft else kv.dtype

    # Lane-dense reshapes (pure metadata, done in the XLA wrapper).
    kv3 = kv.reshape(n, p2, w2c)
    idx3 = r_idx.astype(jnp.int32).reshape(n, p2 * topk, 1)

    chunk_i = _choose_chunk_i(p2, topk, w2c, jnp.dtype(out_dt).itemsize)
    n_chunks = p2 // chunk_i
    rows = chunk_i * topk

    idx_spec = pl.BlockSpec((pl.Squeezed(), rows, 1), lambda b, ic: (b, ic, 0))
    kv_spec = pl.BlockSpec((pl.Squeezed(), p2, w2c), lambda b, ic: (b, 0, 0))
    out_spec = pl.BlockSpec((pl.Squeezed(), rows, w2c), lambda b, ic: (b, ic, 0))

    in_specs = [idx_spec]
    inputs = [idx3]
    if apply_soft:
        w3 = r_weight.reshape(n, p2 * topk, 1)
        in_specs.append(
            pl.BlockSpec((pl.Squeezed(), rows, 1), lambda b, ic: (b, ic, 0)))
        inputs.append(w3)
    in_specs.append(kv_spec)
    inputs.append(kv3)

    # VMEM budget: double-buffered kv slab + out block + index/weight blocks.
    vmem_need = (2 * p2 * w2c * jnp.dtype(kv.dtype).itemsize
                 + 2 * rows * w2c * jnp.dtype(out_dt).itemsize
                 + 2 * rows * 4 * (2 if apply_soft else 1))
    vmem_limit = int(min(max(4 * vmem_need, 32 << 20), 64 << 20))

    kernel = functools.partial(_kv_gather_kernel, p2, apply_soft)

    out = pl.pallas_call(
        kernel,
        out_shape=jax.ShapeDtypeStruct((n, p2 * topk, w2c), out_dt),
        grid_spec=pltpu.PrefetchScalarGridSpec(
            num_scalar_prefetch=0,
            grid=(n, n_chunks),
            in_specs=in_specs,
            out_specs=out_spec,
        ),
        compiler_params=pltpu.CompilerParams(
            dimension_semantics=("parallel", "parallel"),
            vmem_limit_bytes=vmem_limit,
        ),
    )(*inputs)

    return out.reshape(n, p2, topk, w2, c_kv)


def _reference(r_idx, r_weight, kv, mul_weight="none"):
    # Pure-JAX reference mirroring the PyTorch gather semantics.
    n, p2, w2, c_kv = kv.shape
    gathered = jnp.take_along_axis(
        jnp.broadcast_to(kv[:, None], (n, p2, p2, w2, c_kv)),
        r_idx[:, :, :, None, None].astype(jnp.int32),
        axis=2,
    )
    if mul_weight == "soft":
        gathered = r_weight[:, :, :, None, None] * gathered
    return gathered


if __name__ == "__main__":
    key = jax.random.PRNGKey(0)
    k1, k2, k3 = jax.random.split(key, 3)

    n, p2, w2, c_kv, topk = 2, 8, 16, 32, 4

    kv = jax.random.normal(k1, (n, p2, w2, c_kv), dtype=jnp.float32)
    r_idx = jax.random.randint(k2, (n, p2, topk), 0, p2, dtype=jnp.int32)
    r_weight = jax.random.uniform(k3, (n, p2, topk), dtype=jnp.float32)

    # 'soft' mode exercises gather + weight multiply.
    out = jax.block_until_ready(kv_gather(r_idx, r_weight, kv, mul_weight="soft"))
    ref = _reference(r_idx, r_weight, kv, mul_weight="soft")
    assert out.shape == (n, p2, topk, w2, c_kv)
    assert jnp.allclose(out, ref, atol=1e-6, rtol=1e-6)

    # 'none' mode: pure gather.
    out_none = jax.block_until_ready(kv_gather(r_idx, r_weight, kv, "none"))
    ref_none = _reference(r_idx, r_weight, kv, "none")
    assert jnp.allclose(out_none, ref_none, atol=1e-6, rtol=1e-6)

    print("KERNEL_OK")
</pallas_src>

<mosaic_0001>
module attributes {stable_mosaic.version = 11 : i64} {
  func.func @_kv_gather_kernel(%arg0: i32, %arg1: i32, %arg2: memref<1x32x1xi32, #tpu.memory_space<vmem>>, %arg3: memref<1x32x1xf32, #tpu.memory_space<vmem>>, %arg4: memref<1x8x512xf32, #tpu.memory_space<vmem>>, %arg5: memref<1x32x512xf32, #tpu.memory_space<vmem>>) attributes {dimension_semantics = [#tpu.dimension_semantics<parallel>, #tpu.dimension_semantics<parallel>], iteration_bounds = array<i64: 2, 1>, scalar_prefetch = 0 : i64, scratch_operands = 0 : i64, tpu.core_type = #tpu.core_type<tc>, window_params = [{transform_indices = @transform_0, window_bounds = array<i64: 1, 32, 1>}, {transform_indices = @transform_1, window_bounds = array<i64: 1, 32, 1>}, {transform_indices = @transform_2, window_bounds = array<i64: 1, 8, 512>}, {transform_indices = @transform_3, window_bounds = array<i64: 1, 32, 512>}]} {
    %0 = tpu.iota {dimensions = array<i32: 1>} : vector<32x8xi32>
    %c0 = arith.constant 0 : index
    %c0_0 = arith.constant 0 : index
    %c0_1 = arith.constant 0 : index
    %1 = vector.load %arg2[%c0, %c0_0, %c0_1] : memref<1x32x1xi32, #tpu.memory_space<vmem>>, vector<1x32x1xi32>
    %2 = vector.shape_cast %1 : vector<1x32x1xi32> to vector<32x1xi32>
    %3 = vector.broadcast %2 : vector<32x1xi32> to vector<32x8xi32>
    %4 = arith.cmpi eq, %3, %0 : vector<32x8xi32>
    %5 = arith.extui %4 : vector<32x8xi1> to vector<32x8xi32>
    %6 = arith.sitofp %5 : vector<32x8xi32> to vector<32x8xf32>
    %c0_2 = arith.constant 0 : index
    %c0_3 = arith.constant 0 : index
    %c0_4 = arith.constant 0 : index
    %7 = vector.load %arg4[%c0_2, %c0_3, %c0_4] : memref<1x8x512xf32, #tpu.memory_space<vmem>>, vector<1x8x512xf32>
    %8 = vector.shape_cast %7 : vector<1x8x512xf32> to vector<8x512xf32>
    %cst = arith.constant dense<0.000000e+00> : vector<32x512xf32>
    %9 = tpu.matmul %6, %8, %cst {dimension_numbers = #tpu.dot_dimension_numbers<[1], [0], [0], [1], [0, 0, 1, 1], [], []>} : vector<32x8xf32>, vector<8x512xf32>, vector<32x512xf32> -> vector<32x512xf32>
    %c0_5 = arith.constant 0 : index
    %c0_6 = arith.constant 0 : index
    %c0_7 = arith.constant 0 : index
    %10 = vector.load %arg3[%c0_5, %c0_6, %c0_7] : memref<1x32x1xf32, #tpu.memory_space<vmem>>, vector<1x32x1xf32>
    %11 = vector.shape_cast %10 : vector<1x32x1xf32> to vector<32x1xf32>
    %12 = vector.broadcast %11 : vector<32x1xf32> to vector<32x512xf32>
    %13 = arith.mulf %9, %12 : vector<32x512xf32>
    %c0_8 = arith.constant 0 : index
    %c0_9 = arith.constant 0 : index
    %c0_10 = arith.constant 0 : index
    %14 = vector.load %arg5[%c0_8, %c0_9, %c0_10] : memref<1x32x512xf32, #tpu.memory_space<vmem>>, vector<1x32x512xf32>
    %15 = vector.shape_cast %14 : vector<1x32x512xf32> to vector<32x512xf32>
    %16 = vector.shape_cast %13 : vector<32x512xf32> to vector<1x32x512xf32>
    tpu.vector_store %arg5[%c0_8, %c0_9, %c0_10], %16 {strides = array<i32>} : memref<1x32x512xf32, #tpu.memory_space<vmem>>, vector<1x32x512xf32>,
    return
  }
  func.func @transform_0(%arg0: i32, %arg1: i32) -> (i32, i32, i32) {
    %c0_i32 = arith.constant 0 : i32
    %c0_i32_0 = arith.constant 0 : i32
    return %arg0, %arg1, %c0_i32 : i32, i32, i32
  }
  func.func @transform_1(%arg0: i32, %arg1: i32) -> (i32, i32, i32) {
    %c0_i32 = arith.constant 0 : i32
    %c0_i32_0 = arith.constant 0 : i32
    return %arg0, %arg1, %c0_i32 : i32, i32, i32
  }
  func.func @transform_2(%arg0: i32, %arg1: i32) -> (i32, i32, i32) {
    %c0_i32 = arith.constant 0 : i32
    %c0_i32_0 = arith.constant 0 : i32
    %c0_i32_1 = arith.constant 0 : i32
    return %arg0, %c0_i32, %c0_i32_0 : i32, i32, i32
  }
  func.func @transform_3(%arg0: i32, %arg1: i32) -> (i32, i32, i32) {
    %c0_i32 = arith.constant 0 : i32
    %c0_i32_0 = arith.constant 0 : i32
    return %arg0, %arg1, %c0_i32 : i32, i32, i32
  }
}

</mosaic_0001>

<llo_original>
// kernel: tpu_custom_call.1
$region0: #{tpu_custom_call.1}
  #allocation0 [shape = 'u32[]', space=smem, size = 0x4, offset = 0x4, fixed_abs, tag = 'smem constant byte address 0x4 - core index']
  #allocation1 [shape = 'u32[144,128]{1,0:T(1,128)}', space=vmem, size = 0x12000, scoped, tag = 'internal scratch']
  %s0 = inlined_call_operand.vmem [shape: s32[2,32,1], index: 0, kind: input, shape index: {}]
  %s1 = inlined_call_operand.vmem [shape: f32[2,32,1], index: 1, kind: input, shape index: {}]
  %s2 = inlined_call_operand.vmem [shape: f32[2,8,512], index: 2, kind: input, shape index: {}]
  %s3 = inlined_call_operand.hbm [shape: f32[2,32,512], index: 3, kind: output, shape index: {}]
  %s4 = sld [smem:[#allocation0]]
  $region45: #{tpu_custom_call.1} parent=0
    _
  %s6 = ssub.s32 1, %s4
  %s7 = scalar_select 0, %s6, %s4
  $region1: #{tpu_custom_call.1} parent=0
    #allocation2 [shape = 'u8[131072]{0}', space=vmem, size = 0x20000, scoped, tag = 'output window, operand 0']
    #allocation3 [shape = 's32[2]{0}', space=sflag, size = 0x8, scoped, tag = 'scoped memory for tpu_custom_call.1']
    %8 = vsyncpa [#allocation3], 0
    %s9 = scalar_lea.sflag [#allocation3], 1
    %10 = vsyncpa %s9, 0
    loop: start=0, step=1, limit=4
    $region2: #{tpu_custom_call.1} parent=1 // loop_pre_header
      _
    $region3: #{tpu_custom_call.1} parent=1 // loop_header
      %s12 = sphi 0, %s16
      %p13 = scmp.ge.s32.totalorder %s12, 4
      %s19 = sphi 0, %s31
      %s20 = sphi 0, %s27
      %s21 = sphi 0, %s19
      %s22 = sphi 0, %s20
      %s23 = sphi 0, %s21
      %s24 = sphi 0, %s22
      %s36 = sphi 0, %s38
      %s39 = sphi 0, %s36
      %s40 = sphi 0, %s39
      %s56 = sphi 0, %s40
      %s64 = sphi 0, %s66
      %s67 = sphi 0, %s64
      %s68 = sphi 0, %s67
      %s84 = sphi 0, %s68
      %s90 = sphi 0, %s92
      %s93 = sphi 0, %s90
      %s94 = sphi 0, %s93
      %s110 = sphi 0, %s94
      %s118 = sphi 0, %s120
      %s121 = sphi 0, %s118
      %s122 = sphi 0, %s121
      %s138 = sphi 0, %s122
    $region4: #{tpu_custom_call.1} parent=1 // loop_header_branch
      %15 = sbr.rel (%p13) target = $region8
    $region5: #{tpu_custom_call.1} parent=1 // loop_body
      %s17 = ssub.s32 %s12, 1
      %s18 = ssub.s32 %s12, 2
      %s25 = sadd.s32 1, %s20
      %p26 = scmp.ge.s32.totalorder %s25, 1
      %s27 = scalar_select %p26, 0, %s25
      %s28 = sadd.s32 1, %s19
      %s29 = scalar_select %p26, %s28, %s19
      %p30 = scmp.ge.s32.totalorder %s29, 2
      %s31 = scalar_select %p30, 0, %s29
      %s32 = ssub.s32 %s19, %s31
      %s33 = ssub.s32 %s20, %s27
      %s34 = sor.u32 %s32, %s33
      %p35 = scmp.eq.s32.totalorder %s34, 0
      %s37 = sadd.s32 %s36, 1
      %s38 = scalar_select %p35, %s36, %s37
      %p41 = pneg %p35
      %p42 = scmp.eq.s32.totalorder %s12, 1
      %p43 = por %p41, %p42
      %p44 = scmp.ne.s32.totalorder %s36, %s39
      %p45 = scmp.eq.s32.totalorder %s12, 0
      %p46 = por %p44, %p45
      %p47 = scmp.ne.s32.totalorder %s36, %s39
      %p48 = scmp.eq.s32.totalorder %s17, 1
      %p49 = por %p47, %p48
      %p50 = scmp.ne.s32.totalorder %s39, %s40
      %p51 = scmp.eq.s32.totalorder %s17, 0
      %p52 = por %p50, %p51
      %p53 = scmp.ne.s32.totalorder %s39, %s40
      %p54 = scmp.eq.s32.totalorder %s18, 1
      %p55 = por %p53, %p54
      %p57 = scmp.ne.s32.totalorder %s40, %s56
      %p58 = scmp.eq.s32.totalorder %s18, 0
      %p59 = por %p57, %p58
      %s60 = ssub.s32 %s19, %s31
      %s61 = ssub.s32 %s20, %s27
      %s62 = sor.u32 %s60, %s61
      %p63 = scmp.eq.s32.totalorder %s62, 0
      %s65 = sadd.s32 %s64, 1
      %s66 = scalar_select %p63, %s64, %s65
      %p69 = pneg %p63
      %p70 = scmp.eq.s32.totalorder %s12, 1
      %p71 = por %p69, %p70
      %p72 = scmp.ne.s32.totalorder %s64, %s67
      %p73 = scmp.eq.s32.totalorder %s12, 0
      %p74 = por %p72, %p73
      %p75 = scmp.ne.s32.totalorder %s64, %s67
      %p76 = scmp.eq.s32.totalorder %s17, 1
      %p77 = por %p75, %p76
      %p78 = scmp.ne.s32.totalorder %s67, %s68
      %p79 = scmp.eq.s32.totalorder %s17, 0
      %p80 = por %p78, %p79
      %p81 = scmp.ne.s32.totalorder %s67, %s68
      %p82 = scmp.eq.s32.totalorder %s18, 1
      %p83 = por %p81, %p82
      %p85 = scmp.ne.s32.totalorder %s68, %s84
      %p86 = scmp.eq.s32.totalorder %s18, 0
      %p87 = por %p85, %p86
      %s88 = ssub.s32 %s19, %s31
      %p89 = scmp.eq.s32.totalorder %s88, 0
      %s91 = sadd.s32 %s90, 1
      %s92 = scalar_select %p89, %s90, %s91
      %p95 = pneg %p89
      %p96 = scmp.eq.s32.totalorder %s12, 1
      %p97 = por %p95, %p96
      %p98 = scmp.ne.s32.totalorder %s90, %s93
      %p99 = scmp.eq.s32.totalorder %s12, 0
      %p100 = por %p98, %p99
      %p101 = scmp.ne.s32.totalorder %s90, %s93
      %p102 = scmp.eq.s32.totalorder %s17, 1
      %p103 = por %p101, %p102
      %p104 = scmp.ne.s32.totalorder %s93, %s94
      %p105 = scmp.eq.s32.totalorder %s17, 0
      %p106 = por %p104, %p105
      %p107 = scmp.ne.s32.totalorder %s93, %s94
      %p108 = scmp.eq.s32.totalorder %s18, 1
      %p109 = por %p107, %p108
      %p111 = scmp.ne.s32.totalorder %s94, %s110
      %p112 = scmp.eq.s32.totalorder %s18, 0
      %p113 = por %p111, %p112
      %s114 = ssub.s32 %s19, %s31
      %s115 = ssub.s32 %s20, %s27
      %s116 = sor.u32 %s114, %s115
      %p117 = scmp.eq.s32.totalorder %s116, 0
      %s119 = sadd.s32 %s118, 1
      %s120 = scalar_select %p117, %s118, %s119
      %p123 = pneg %p117
      %p124 = scmp.eq.s32.totalorder %s12, 1
      %p125 = por %p123, %p124
      %p126 = scmp.ne.s32.totalorder %s118, %s121
      %p127 = scmp.eq.s32.totalorder %s12, 0
      %p128 = por %p126, %p127
      %p129 = scmp.ne.s32.totalorder %s118, %s121
      %p130 = scmp.eq.s32.totalorder %s17, 1
      %p131 = por %p129, %p130
      %p132 = scmp.ne.s32.totalorder %s121, %s122
      %p133 = scmp.eq.s32.totalorder %s17, 0
      %p134 = por %p132, %p133
      %p135 = scmp.ne.s32.totalorder %s121, %s122
      %p136 = scmp.eq.s32.totalorder %s18, 1
      %p137 = por %p135, %p136
      %p139 = scmp.ne.s32.totalorder %s122, %s138
      %p140 = scmp.eq.s32.totalorder %s18, 0
      %p141 = por %p139, %p140
      %p142 = scmp.le.s32.totalorder 1, %s12
      %p143 = scmp.lt.s32.totalorder %s12, 3
      %p144 = pnand %p142, %p143
      %p145 = pneg %p144
      // Predicated region
      $region9: #{tpu_custom_call.1} parent=5 // pred_check
        _
      $region10: #{tpu_custom_call.1} parent=5 // pred_check_branch
        %147 = sbr.rel (%p144) target = $region12
      $region11: #{tpu_custom_call.1} parent=5 // pred_region
        %s148 = ssub.s32 %s12, 1
      $region12: #{tpu_custom_call.1} parent=5 // pred_fallthru
        _
      %p149 = scmp.lt.s32.totalorder %s12, 2
      // Predicated region
      $region13: #{tpu_custom_call.1} parent=5 // pred_check
        %p150 = pneg %p149
      $region14: #{tpu_custom_call.1} parent=5 // pred_check_branch
        %152 = sbr.rel (%p150) target = $region16
      $region15: #{tpu_custom_call.1} parent=5 // pred_region
        // Predicated region
        $region17: #{tpu_custom_call.1} parent=15 // pred_check
          %p153 = pneg %p46
        $region18: #{tpu_custom_call.1} parent=15 // pred_check_branch
          %155 = sbr.rel (%p153) target = $region20
        $region19: #{tpu_custom_call.1} parent=15 // pred_region
          %s156 = smul.u32 4, %s20
          %p157 = scmp.lt.s32.totalorder %s19, 1
          %s158 = scalar_select %p157, %s19, 1
          %p159 = scmp.lt.s32.totalorder %s156, 3
          %s160 = scalar_select %p159, %s156, 3
          %s161 = smul.addr %s158, 4
          %s162 = sadd.s32 %s160, %s161
          %s163 = smul.addr %s162, 8
          %s164 = scalar_lea.vmem %s0, %s163
          %s165 = smul.u32 4, %s20
        $region20: #{tpu_custom_call.1} parent=15 // pred_fallthru
          _
        // Predicated region
        $region21: #{tpu_custom_call.1} parent=15 // pred_check
          %p166 = pneg %p74
        $region22: #{tpu_custom_call.1} parent=15 // pred_check_branch
          %168 = sbr.rel (%p166) target = $region24
        $region23: #{tpu_custom_call.1} parent=15 // pred_region
          %s169 = smul.u32 4, %s20
          %p170 = scmp.lt.s32.totalorder %s19, 1
          %s171 = scalar_select %p170, %s19, 1
          %p172 = scmp.lt.s32.totalorder %s169, 3
          %s173 = scalar_select %p172, %s169, 3
          %s174 = smul.addr %s171, 4
          %s175 = sadd.s32 %s173, %s174
          %s176 = smul.addr %s175, 8
          %s177 = scalar_lea.vmem %s1, %s176
          %s178 = smul.u32 4, %s20
        $region24: #{tpu_custom_call.1} parent=15 // pred_fallthru
          _
        // Predicated region
        $region25: #{tpu_custom_call.1} parent=15 // pred_check
          %p179 = pneg %p100
        $region26: #{tpu_custom_call.1} parent=15 // pred_check_branch
          %181 = sbr.rel (%p179) target = $region28
        $region27: #{tpu_custom_call.1} parent=15 // pred_region
          %p182 = scmp.lt.s32.totalorder %s19, 1
          %s183 = scalar_select %p182, %s19, 1
          %s184 = smul.addr %s183, 4
          %s185 = smul.addr %s184, 8
          %s186 = scalar_lea.vmem %s2, %s185
        $region28: #{tpu_custom_call.1} parent=15 // pred_fallthru
          _
      $region16: #{tpu_custom_call.1} parent=5 // pred_fallthru
        _
      %p187 = scmp.le.s32.totalorder 1, %s12
      %p188 = scmp.lt.s32.totalorder %s12, 3
      %p189 = pnand %p187, %p188
      %p190 = pneg %p189
      // Predicated region
      $region29: #{tpu_custom_call.1} parent=5 // pred_check
        _
      $region30: #{tpu_custom_call.1} parent=5 // pred_check_branch
        %192 = sbr.rel (%p189) target = $region32
      $region31: #{tpu_custom_call.1} parent=5 // pred_region
        %s193 = ssub.s32 %s12, 1
        %s194 = smul.u32 4, %s22
        %p195 = scmp.lt.s32.totalorder %s21, 1
        %s196 = scalar_select %p195, %s21, 1
        %p197 = scmp.lt.s32.totalorder %s194, 3
        %s198 = scalar_select %p197, %s194, 3
        %s199 = smul.addr %s196, 4
        %s200 = sadd.s32 %s198, %s199
        %s201 = smul.addr %s200, 8
        %s202 = scalar_lea.vmem %s0, %s201
        %p203 = pneg %p52
        %p204 = pneg %p49
        %s205 = smul.u32 4, %s22
        %p206 = scmp.lt.s32.totalorder %s21, 1
        %s207 = scalar_select %p206, %s21, 1
        %p208 = scmp.lt.s32.totalorder %s205, 3
        %s209 = scalar_select %p208, %s205, 3
        %s210 = smul.addr %s207, 4
        %s211 = sadd.s32 %s209, %s210
        %s212 = smul.addr %s211, 8
        %s213 = scalar_lea.vmem %s1, %s212
        %p214 = pneg %p80
        %p215 = pneg %p77
        %p216 = scmp.lt.s32.totalorder %s21, 1
        %s217 = scalar_select %p216, %s21, 1
        %s218 = smul.addr %s217, 4
        %s219 = smul.addr %s218, 8
        %s220 = scalar_lea.vmem %s2, %s219
        %p221 = pneg %p106
        %p222 = pneg %p103
        %p223 = pneg %p134
        %p224 = pneg %p131
        %s225 = sand.u32 %s121, 1
        %s226 = scalar_lea.sflag [#allocation3], %s225
        %s227 = sand.u32 %s121, 1
        %s228 = smul.addr %s227, 128
        %s229 = scalar_lea.vmem [#allocation2], %s228
        %s230 = smul.u32 4, %s22
        %p231 = scmp.lt.s32.totalorder %s21, 1
        %s232 = scalar_select %p231, %s21, 1
        %p233 = scmp.lt.s32.totalorder %s230, 3
        %s234 = scalar_select %p233, %s230, 3
        %s235 = smul.addr %s232, 4
        %s236 = sadd.s32 %s234, %s235
        %s237 = smul.addr %s236, 8
        %s238 = scalar_lea.vmem %s0, %s237
        %s239 = smul.u32 4, %s22
        %s240 = smul.u32 4, %s22
        %p241 = scmp.lt.s32.totalorder %s21, 1
        %s242 = scalar_select %p241, %s21, 1
        %p243 = scmp.lt.s32.totalorder %s240, 3
        %s244 = scalar_select %p243, %s240, 3
        %s245 = smul.addr %s242, 4
        %s246 = sadd.s32 %s244, %s245
        %s247 = smul.addr %s246, 8
        %s248 = scalar_lea.vmem %s1, %s247
        %s249 = smul.u32 4, %s22
        %p250 = scmp.lt.s32.totalorder %s21, 1
        %s251 = scalar_select %p250, %s21, 1
        %s252 = smul.addr %s251, 4
        %s253 = smul.addr %s252, 8
        %s254 = scalar_lea.vmem %s2, %s253
        %s255 = smul.u32 4, %s22
        %v256 = vlaneseq
        %v257 = vand.u32 %v256, 127
        %v258 = vld [vmem:[%s238] sm:$0xff]
        %v259 = vld [vmem:[%s238 + $0x8] sm:$0xff]
        %v260 = vld [vmem:[%s238 + $0x10] sm:$0xff]
        %v261 = vld [vmem:[%s238 + $0x18] sm:$0xff]
        %262 = vset.pattern.permute.xlu0 0
        %263 = vperm.xlu0 %262, %v258
        %v264 = vpop.permute.xlu0 %263
        %265 = vset.pattern.permute.xlu0 0
        %266 = vperm.xlu0 %265, %v259
        %v267 = vpop.permute.xlu0 %266
        %268 = vset.pattern.permute.xlu0 0
        %269 = vperm.xlu0 %268, %v260
        %v270 = vpop.permute.xlu0 %269
        %271 = vset.pattern.permute.xlu0 0
        %272 = vperm.xlu0 %271, %v261
        %v273 = vpop.permute.xlu0 %272
        %vm274 = vcmp.eq.s32.totalorder %v264, %v257
        %vm275 = vcmp.eq.s32.totalorder %v267, %v257
        %vm276 = vcmp.eq.s32.totalorder %v270, %v257
        %vm277 = vcmp.eq.s32.totalorder %v273, %v257
        %v278 = vsel %vm274, 1, 0
        %v279 = vsel %vm275, 1, 0
        %v280 = vsel %vm276, 1, 0
        %v281 = vsel %vm277, 1, 0
        %v282 = vcvt.s32.f32 %v278
        %v283 = vcvt.s32.f32 %v279
        %v284 = vcvt.s32.f32 %v280
        %v285 = vcvt.s32.f32 %v281
        %v286 = vld [vmem:[%s254] sm:$0xff]
        %v287 = vld [vmem:[%s254 + $0x8] sm:$0xff]
        %v288 = vld [vmem:[%s254 + $0x10] sm:$0xff]
        %v289 = vld [vmem:[%s254 + $0x18] sm:$0xff]
        %vm290 = vcmask 64512
        %v292 = vsel %vm290, %v282, 0
        %v295 = vsel %vm290, %v283, 0
        %v298 = vsel %vm290, %v284, 0
        %v301 = vsel %vm290, %v285, 0
        %303 = vmatprep.subr.mxu0 0.0
        %304 = vmatpush1.msra.mxu0 0.0
        %305 = vmatprep.subr.mxu0 0.0
        %306 = vmatpush1.msra.mxu0 0.0
        %307 = vmatprep.subr.mxu0 0.0
        %308 = vmatpush1.msra.mxu0 0.0
        %309 = vmatprep.subr.mxu0 0.0
        %310 = vmatpush1.msra.mxu0 0.0
        %311 = vmatprep.subr.mxu0 0.0
        %312 = vmatpush1.msra.mxu0 0.0
        %313 = vmatprep.subr.mxu0 0.0
        %314 = vmatpush1.msra.mxu0 0.0
        %315 = vmatprep.subr.mxu0 0.0
        %316 = vmatpush1.msra.mxu0 0.0
        %317 = vmatprep.subr.mxu0 0.0
        %318 = vmatpush1.msra.mxu0 0.0
        %319 = vmatprep.subr.mxu0 0.0
        %320 = vmatpush1.msra.mxu0 0.0
        %321 = vmatprep.subr.mxu0 0.0
        %322 = vmatpush1.msra.mxu0 0.0
        %323 = vmatprep.subr.mxu0 0.0
        %324 = vmatpush1.msra.mxu0 0.0
        %325 = vmatprep.subr.mxu0 0.0
        %326 = vmatpush1.msra.mxu0 0.0
        %327 = vmatprep.subr.mxu0 0.0
        %328 = vmatpush1.msra.mxu0 0.0
        %329 = vmatprep.subr.mxu0 0.0
        %330 = vmatpush1.msra.mxu0 0.0
        %331 = vmatprep.subr.mxu0 0.0
        %332 = vmatpush1.msra.mxu0 0.0
        %333 = vmatprep.subr.mxu0 %v287
        %334 = vmatpush1.msra.mxu0 %v286
        %335 = vmatprep.subr.mxu0 0.0
        %336 = vmatpush2.msra.mxu0 0.0
        %337 = vmatprep.subr.mxu0 0.0
        %338 = vmatpush2.msra.mxu0 0.0
        %339 = vmatprep.subr.mxu0 0.0
        %340 = vmatpush2.msra.mxu0 0.0
        %341 = vmatprep.subr.mxu0 0.0
        %342 = vmatpush2.msra.mxu0 0.0
        %343 = vmatprep.subr.mxu0 0.0
        %344 = vmatpush2.msra.mxu0 0.0
        %345 = vmatprep.subr.mxu0 0.0
        %346 = vmatpush2.msra.mxu0 0.0
        %347 = vmatprep.subr.mxu0 0.0
        %348 = vmatpush2.msra.mxu0 0.0
        %349 = vmatprep.subr.mxu0 0.0
        %350 = vmatpush2.msra.mxu0 0.0
        %351 = vmatprep.subr.mxu0 0.0
        %352 = vmatpush2.msra.mxu0 0.0
        %353 = vmatprep.subr.mxu0 0.0
        %354 = vmatpush2.msra.mxu0 0.0
        %355 = vmatprep.subr.mxu0 0.0
        %356 = vmatpush2.msra.mxu0 0.0
        %357 = vmatprep.subr.mxu0 0.0
        %358 = vmatpush2.msra.mxu0 0.0
        %359 = vmatprep.subr.mxu0 0.0
        %360 = vmatpush2.msra.mxu0 0.0
        %361 = vmatprep.subr.mxu0 0.0
        %362 = vmatpush2.msra.mxu0 0.0
        %363 = vmatprep.subr.mxu0 0.0
        %364 = vmatpush2.msra.mxu0 0.0
        %365 = vmatprep.subr.mxu0 0.0
        %366 = vmatpush2.msra.mxu0 0.0
        %367 = vmatprep.mubr.f32.mxu0 0.0
        %368 = vmatmul.mubr.f32.gmra.mxu0 %v292
        %v369 = vpop.f32.mrf.mxu0
        %v370 = vadd.f32 0.0, %v369
        %v371 = vpop.f32.mrf.mxu0
        %v372 = vadd.f32 0.0, %v371
        %373 = vmatprep.mubr.f32.mxu0 0.0
        %374 = vmatmul.mubr.f32.gmra.mxu0 %v295
        %v375 = vpop.f32.mrf.mxu0
        %v376 = vadd.f32 0.0, %v375
        %v377 = vpop.f32.mrf.mxu0
        %v378 = vadd.f32 0.0, %v377
        %379 = vmatprep.mubr.f32.mxu0 0.0
        %380 = vmatmul.mubr.f32.gmra.mxu0 %v298
        %v381 = vpop.f32.mrf.mxu0
        %v382 = vadd.f32 0.0, %v381
        %v383 = vpop.f32.mrf.mxu0
        %v384 = vadd.f32 0.0, %v383
        %385 = vmatprep.mubr.f32.mxu0 0.0
        %386 = vmatmul.mubr.f32.gmra.mxu0 %v301
        %v387 = vpop.f32.mrf.mxu0
        %v388 = vadd.f32 0.0, %v387
        %v389 = vpop.f32.mrf.mxu0
        %v390 = vadd.f32 0.0, %v389
        %391 = vdwg.mxu0
        %392 = vmatprep.subr.mxu0 0.0
        %393 = vmatpush1.msra.mxu0 0.0
        %394 = vmatprep.subr.mxu0 0.0
        %395 = vmatpush1.msra.mxu0 0.0
        %396 = vmatprep.subr.mxu0 0.0
        %397 = vmatpush1.msra.mxu0 0.0
        %398 = vmatprep.subr.mxu0 0.0
        %399 = vmatpush1.msra.mxu0 0.0
        %400 = vmatprep.subr.mxu0 0.0
        %401 = vmatpush1.msra.mxu0 0.0
        %402 = vmatprep.subr.mxu0 0.0
        %403 = vmatpush1.msra.mxu0 0.0
        %404 = vmatprep.subr.mxu0 0.0
        %405 = vmatpush1.msra.mxu0 0.0
        %406 = vmatprep.subr.mxu0 0.0
        %407 = vmatpush1.msra.mxu0 0.0
        %408 = vmatprep.subr.mxu0 0.0
        %409 = vmatpush1.msra.mxu0 0.0
        %410 = vmatprep.subr.mxu0 0.0
        %411 = vmatpush1.msra.mxu0 0.0
        %412 = vmatprep.subr.mxu0 0.0
        %413 = vmatpush1.msra.mxu0 0.0
        %414 = vmatprep.subr.mxu0 0.0
        %415 = vmatpush1.msra.mxu0 0.0
        %416 = vmatprep.subr.mxu0 0.0
        %417 = vmatpush1.msra.mxu0 0.0
        %418 = vmatprep.subr.mxu0 0.0
        %419 = vmatpush1.msra.mxu0 0.0
        %420 = vmatprep.subr.mxu0 0.0
        %421 = vmatpush1.msra.mxu0 0.0
        %422 = vmatprep.subr.mxu0 %v289
        %423 = vmatpush1.msra.mxu0 %v288
        %424 = vmatprep.subr.mxu0 0.0
        %425 = vmatpush2.msra.mxu0 0.0
        %426 = vmatprep.subr.mxu0 0.0
        %427 = vmatpush2.msra.mxu0 0.0
        %428 = vmatprep.subr.mxu0 0.0
        %429 = vmatpush2.msra.mxu0 0.0
        %430 = vmatprep.subr.mxu0 0.0
        %431 = vmatpush2.msra.mxu0 0.0
        %432 = vmatprep.subr.mxu0 0.0
        %433 = vmatpush2.msra.mxu0 0.0
        %434 = vmatprep.subr.mxu0 0.0
        %435 = vmatpush2.msra.mxu0 0.0
        %436 = vmatprep.subr.mxu0 0.0
        %437 = vmatpush2.msra.mxu0 0.0
        %438 = vmatprep.subr.mxu0 0.0
        %439 = vmatpush2.msra.mxu0 0.0
        %440 = vmatprep.subr.mxu0 0.0
        %441 = vmatpush2.msra.mxu0 0.0
        %442 = vmatprep.subr.mxu0 0.0
        %443 = vmatpush2.msra.mxu0 0.0
        %444 = vmatprep.subr.mxu0 0.0
        %445 = vmatpush2.msra.mxu0 0.0
        %446 = vmatprep.subr.mxu0 0.0
        %447 = vmatpush2.msra.mxu0 0.0
        %448 = vmatprep.subr.mxu0 0.0
        %449 = vmatpush2.msra.mxu0 0.0
        %450 = vmatprep.subr.mxu0 0.0
        %451 = vmatpush2.msra.mxu0 0.0
        %452 = vmatprep.subr.mxu0 0.0
        %453 = vmatpush2.msra.mxu0 0.0
        %454 = vmatprep.subr.mxu0 0.0
        %455 = vmatpush2.msra.mxu0 0.0
        %456 = vmatprep.mubr.f32.mxu0 0.0
        %457 = vmatmul.mubr.f32.gmra.mxu0 %v292
        %v458 = vpop.f32.mrf.mxu0
        %v459 = vadd.f32 0.0, %v458
        %v460 = vpop.f32.mrf.mxu0
        %v461 = vadd.f32 0.0, %v460
        %462 = vmatprep.mubr.f32.mxu0 0.0
        %463 = vmatmul.mubr.f32.gmra.mxu0 %v295
        %v464 = vpop.f32.mrf.mxu0
        %v465 = vadd.f32 0.0, %v464
        %v466 = vpop.f32.mrf.mxu0
        %v467 = vadd.f32 0.0, %v466
        %468 = vmatprep.mubr.f32.mxu0 0.0
        %469 = vmatmul.mubr.f32.gmra.mxu0 %v298
        %v470 = vpop.f32.mrf.mxu0
        %v471 = vadd.f32 0.0, %v470
        %v472 = vpop.f32.mrf.mxu0
        %v473 = vadd.f32 0.0, %v472
        %474 = vmatprep.mubr.f32.mxu0 0.0
        %475 = vmatmul.mubr.f32.gmra.mxu0 %v301
        %v476 = vpop.f32.mrf.mxu0
        %v477 = vadd.f32 0.0, %v476
        %v478 = vpop.f32.mrf.mxu0
        %v479 = vadd.f32 0.0, %v478
        %480 = vdwg.mxu0
        %v481 = vld [vmem:[%s248] sm:$0xff]
        %v482 = vld [vmem:[%s248 + $0x8] sm:$0xff]
        %v483 = vld [vmem:[%s248 + $0x10] sm:$0xff]
        %v484 = vld [vmem:[%s248 + $0x18] sm:$0xff]
        %486 = vset.pattern.permute.xlu0 0
        %487 = vperm.xlu0 %486, %v481
        %v488 = vpop.permute.xlu0 %487
        %491 = vset.pattern.permute.xlu0 0
        %492 = vperm.xlu0 %491, %v482
        %v493 = vpop.permute.xlu0 %492
        %496 = vset.pattern.permute.xlu0 0
        %497 = vperm.xlu0 %496, %v483
        %v498 = vpop.permute.xlu0 %497
        %501 = vset.pattern.permute.xlu0 0
        %502 = vperm.xlu0 %501, %v484
        %v503 = vpop.permute.xlu0 %502
        %v505 = vmul.f32 %v370, %v488
        %v506 = vmul.f32 %v372, %v488
        %v507 = vmul.f32 %v459, %v488
        %v508 = vmul.f32 %v461, %v488
        %v509 = vmul.f32 %v376, %v493
        %v510 = vmul.f32 %v378, %v493
        %v511 = vmul.f32 %v465, %v493
        %v512 = vmul.f32 %v467, %v493
        %v513 = vmul.f32 %v382, %v498
        %v514 = vmul.f32 %v384, %v498
        %v515 = vmul.f32 %v471, %v498
        %v516 = vmul.f32 %v473, %v498
        %v517 = vmul.f32 %v388, %v503
        %v518 = vmul.f32 %v390, %v503
        %v519 = vmul.f32 %v477, %v503
        %v520 = vmul.f32 %v479, %v503
        %521 = vst [vmem:[%s229] sm:$0xff] %v505
        %522 = vst [vmem:[%s229 + $0x8] sm:$0xff] %v506
        %523 = vst [vmem:[%s229 + $0x10] sm:$0xff] %v507
        %524 = vst [vmem:[%s229 + $0x18] sm:$0xff] %v508
        %525 = vst [vmem:[%s229 + $0x20] sm:$0xff] %v509
        %526 = vst [vmem:[%s229 + $0x28] sm:$0xff] %v510
        %527 = vst [vmem:[%s229 + $0x30] sm:$0xff] %v511
        %528 = vst [vmem:[%s229 + $0x38] sm:$0xff] %v512
        %529 = vst [vmem:[%s229 + $0x40] sm:$0xff] %v513
        %530 = vst [vmem:[%s229 + $0x48] sm:$0xff] %v514
        %531 = vst [vmem:[%s229 + $0x50] sm:$0xff] %v515
        %532 = vst [vmem:[%s229 + $0x58] sm:$0xff] %v516
        %533 = vst [vmem:[%s229 + $0x60] sm:$0xff] %v517
        %534 = vst [vmem:[%s229 + $0x68] sm:$0xff] %v518
        %535 = vst [vmem:[%s229 + $0x70] sm:$0xff] %v519
        %536 = vst [vmem:[%s229 + $0x78] sm:$0xff] %v520
        %s537 = sand.u32 %s121, 1
        %s538 = scalar_lea.sflag [#allocation3], %s537
        %s539 = sand.u32 %s121, 1
        %s540 = smul.addr %s539, 128
        %s541 = scalar_lea.vmem [#allocation2], %s540
        // Predicated region
        $region33: #{tpu_custom_call.1} parent=31 // pred_check
          %p542 = pneg %p131
        $region34: #{tpu_custom_call.1} parent=31 // pred_check_branch
          %544 = sbr.rel (%p542) target = $region36
        $region35: #{tpu_custom_call.1} parent=31 // pred_region
          %s545 = smul.u32 4, %s22
          %s547 = ssub.s32 2048, 2048
          %548 = vsyncadd %s538, %s547
          %s549 = smul.addr %s545, 4
          %s550 = smul.addr %s21, 16
          %s551 = sadd.s32 %s549, %s550
          %s552 = smul.addr %s551, 128
          %s553 = scalar_lea.hbm %s3, %s552
          %s554 = sshll.u32 %s541, 4
          %s555 = int_to_ptr.vmem [resolvable:$true] %s554
          %560 = dma.vmem_to_hbm [thread:$0]  %s555, 2048, %s553, %s538, 512, 512, 32
        $region36: #{tpu_custom_call.1} parent=31 // pred_fallthru
          _
      $region32: #{tpu_custom_call.1} parent=5 // pred_fallthru
        _
      %p561 = scmp.le.s32.totalorder 2, %s12
      // Predicated region
      $region37: #{tpu_custom_call.1} parent=5 // pred_check
        %p562 = pneg %p561
      $region38: #{tpu_custom_call.1} parent=5 // pred_check_branch
        %564 = sbr.rel (%p562) target = $region40
      $region39: #{tpu_custom_call.1} parent=5 // pred_region
        %s565 = ssub.s32 %s12, 2
        // Predicated region
        $region41: #{tpu_custom_call.1} parent=39 // pred_check
          %p566 = pneg %p137
        $region42: #{tpu_custom_call.1} parent=39 // pred_check_branch
          %568 = sbr.rel (%p566) target = $region44
        $region43: #{tpu_custom_call.1} parent=39 // pred_region
          %s569 = sand.u32 %s122, 1
          %s570 = scalar_lea.sflag [#allocation3], %s569
          %s571 = sand.u32 %s122, 1
          %s572 = smul.addr %s571, 128
          %s573 = scalar_lea.vmem [#allocation2], %s572
          %574 = dma.done %s570, 2048
        $region44: #{tpu_custom_call.1} parent=39 // pred_fallthru
          _
      $region40: #{tpu_custom_call.1} parent=5 // pred_fallthru
        _
    $region6: #{tpu_custom_call.1} parent=1 // loop_footer
      %s16 = sadd.s32 1, %s12
    $region7: #{tpu_custom_call.1} parent=1 // loop_footer_branch
      %11 = sbr.rel target = $region3
    $region8: #{tpu_custom_call.1} parent=1 // loop_exit
      _
    %575 = vsyncpa [#allocation3], 1
    %s576 = scalar_lea.sflag [#allocation3], 1
    %577 = vsyncpa %s576, 1

</llo_original>
